<compile_context>
chip_gen: v7x
topology: tpu7x:2x2x1
jax: 0.10.0
libtpu: 0.0.40
codegen_flags: <defaults>
</compile_context>

<pallas_src>
import functools

import jax
import jax.numpy as jnp
from jax.experimental import pallas as pl
from jax.experimental.pallas import tpu as pltpu

HIDDEN_DIM = 32
INPUT_DIM = 13
LAYER_DIM = 1   # single LSTM layer (matches layer_dim=1)
OUTPUT_DIM = 3


def _lstm_fc_kernel(x_ref, w_ih_ref, w_hh_ref, b_ref, w_fc_ref, b_fc_ref, out_ref,
                    *, seq_len, hidden_dim, block_b):
    """One batch-block of the LSTM recurrence + final FC, fully resident in VMEM.

    x_ref    : (T*bm, D) bf16   per-block time-major input, row = t*bm + b
    w_ih_ref : (D, 4H)   bf16   pre-transposed input->gates weight
    w_hh_ref : (H, 4H)   bf16   pre-transposed hidden->gates weight
    b_ref    : (1, 4H)   f32    b_ih + b_hh
    w_fc_ref : (H, O)    bf16   pre-transposed FC weight
    b_fc_ref : (1, O)    f32    FC bias
    out_ref  : (bm, O)   f32    logits for the last timestep
    """
    T, H, bm = seq_len, hidden_dim, block_b

    # ---- Hoisted input projection: one batched MXU matmul for ALL timesteps.
    gx = (
        jnp.dot(x_ref[...], w_ih_ref[...], preferred_element_type=jnp.float32)
        + b_ref[...]
    )  # (T*bm, 4H) f32, gate layout i | f | g | o (PyTorch order)

    w_hh = w_hh_ref[...]  # (H, 4H) bf16, held live across the unrolled loop

    h = jnp.zeros((bm, H), jnp.float32)
    c = jnp.zeros((bm, H), jnp.float32)

    # ---- Fully unrolled recurrence (T static & small): per step only the
    # tiny h @ W_hh dot plus elementwise gate math is on the serial chain.
    for t in range(T):
        gates = gx[t * bm:(t + 1) * bm, :] + jnp.dot(
            h.astype(jnp.bfloat16), w_hh, preferred_element_type=jnp.float32
        )  # (bm, 4H) f32
        # Whole-vreg activations (one sigmoid + one tanh over all 128 lanes),
        # then static 32-lane block slices for the gates.
        sig = jax.nn.sigmoid(gates)
        th = jnp.tanh(gates)
        i_g = sig[:, 0 * H:1 * H]
        f_g = sig[:, 1 * H:2 * H]
        g_g = th[:, 2 * H:3 * H]
        o_g = sig[:, 3 * H:4 * H]
        c = f_g * c + i_g * g_g
        h = o_g * jnp.tanh(c)

    # ---- Final Linear on the last hidden state.
    out_ref[...] = (
        jnp.dot(h.astype(jnp.bfloat16), w_fc_ref[...],
                preferred_element_type=jnp.float32)
        + b_fc_ref[...]
    )


def lstm_model_forward(x, params, *, block_b=None):
    """x: (B, T, D) float32 -> (B, OUTPUT_DIM) float32."""
    B, T, D = x.shape
    H, O = HIDDEN_DIM, OUTPUT_DIM

    if block_b is None:
        block_b = B if B <= 8 else 8        # batch tile per grid step
    assert B % block_b == 0, "batch must be divisible by the batch block size"
    nb = B // block_b

    # Per-block, time-major, flattened input: (nb, T*bm, D), row = t*bm + b.
    # (Layout plumbing done once on the XLA side; x also cast to bf16 so the
    # kernel's MXU matmuls run with bf16 operands and f32 accumulation.)
    x_blk = (
        x.reshape(nb, block_b, T, D)
         .transpose(0, 2, 1, 3)
         .reshape(nb, T * block_b, D)
         .astype(jnp.bfloat16)
    )

    w_ih_t = params["w_ih"].T.astype(jnp.bfloat16)                  # (D, 4H)
    w_hh_t = params["w_hh"].T.astype(jnp.bfloat16)                  # (H, 4H)
    b_sum = (params["b_ih"] + params["b_hh"]).reshape(1, 4 * H).astype(jnp.float32)
    w_fc_t = params["w_fc"].T.astype(jnp.bfloat16)                  # (H, O)
    b_fc = params["b_fc"].reshape(1, O).astype(jnp.float32)

    kernel = functools.partial(
        _lstm_fc_kernel, seq_len=T, hidden_dim=H, block_b=block_b
    )

    return pl.pallas_call(
        kernel,
        out_shape=jax.ShapeDtypeStruct((B, O), jnp.float32),
        grid=(nb,),
        in_specs=[
            pl.BlockSpec((None, T * block_b, D), lambda b: (b, 0, 0)),  # x block
            pl.BlockSpec((D, 4 * H), lambda b: (0, 0)),                 # W_ih
            pl.BlockSpec((H, 4 * H), lambda b: (0, 0)),                 # W_hh
            pl.BlockSpec((1, 4 * H), lambda b: (0, 0)),                 # b_ih+b_hh
            pl.BlockSpec((H, O), lambda b: (0, 0)),                     # W_fc
            pl.BlockSpec((1, O), lambda b: (0, 0)),                     # b_fc
        ],
        out_specs=pl.BlockSpec((block_b, O), lambda b: (b, 0)),
        compiler_params=pltpu.CompilerParams(
            dimension_semantics=("parallel",)),
    )(x_blk, w_ih_t, w_hh_t, b_sum, w_fc_t, b_fc)


def init_params(key):
    """Deterministic parameter init (PyTorch-style uniform(-1/sqrt(H), 1/sqrt(H)))."""
    H, D, O = HIDDEN_DIM, INPUT_DIM, OUTPUT_DIM
    k = 1.0 / jnp.sqrt(jnp.float32(H))
    keys = jax.random.split(key, 6)
    u = lambda kk, shape: jax.random.uniform(kk, shape, jnp.float32, -k, k)
    return {
        "w_ih": u(keys[0], (4 * H, D)),
        "w_hh": u(keys[1], (4 * H, H)),
        "b_ih": u(keys[2], (4 * H,)),
        "b_hh": u(keys[3], (4 * H,)),
        "w_fc": u(keys[4], (O, H)),
        "b_fc": u(keys[5], (O,)),
    }


def _reference_forward(x, params):
    """Pure-JAX f32 reference of the PyTorch math (for sanity check)."""
    B, T, D = x.shape
    H = HIDDEN_DIM
    h = jnp.zeros((B, H), jnp.float32)
    c = jnp.zeros((B, H), jnp.float32)
    for t in range(T):
        gates = x[:, t, :] @ params["w_ih"].T + h @ params["w_hh"].T \
                + params["b_ih"] + params["b_hh"]
        i = jax.nn.sigmoid(gates[:, 0 * H:1 * H])
        f = jax.nn.sigmoid(gates[:, 1 * H:2 * H])
        g = jnp.tanh(gates[:, 2 * H:3 * H])
        o = jax.nn.sigmoid(gates[:, 3 * H:4 * H])
        c = f * c + i * g
        h = o * jnp.tanh(c)
    return h @ params["w_fc"].T + params["b_fc"]


if __name__ == "__main__":
    B, T, D = 2, 8, INPUT_DIM
    key = jax.random.PRNGKey(0)
    k_x, k_p = jax.random.split(key)

    x = jax.random.normal(k_x, (B, T, D), dtype=jnp.float32)
    params = init_params(k_p)

    out = lstm_model_forward(x, params)
    out = jax.block_until_ready(out)

    ref = _reference_forward(x, params)
    assert out.shape == (B, OUTPUT_DIM)
    # Tolerance accounts for bf16 MXU operands (f32 accumulation) in the kernel
    # vs. the pure-f32 reference; typical error is ~1e-3.
    assert jnp.allclose(out, ref, atol=5e-2, rtol=5e-2), (out, ref)

    print("KERNEL_OK")
</pallas_src>

<mosaic_0001>
module attributes {stable_mosaic.version = 11 : i64} {
  func.func @_lstm_fc_kernel(%arg0: i32, %arg1: memref<1x16x13xbf16, #tpu.memory_space<vmem>>, %arg2: memref<13x128xbf16, #tpu.memory_space<vmem>>, %arg3: memref<32x128xbf16, #tpu.memory_space<vmem>>, %arg4: memref<1x128xf32, #tpu.memory_space<vmem>>, %arg5: memref<32x3xbf16, #tpu.memory_space<vmem>>, %arg6: memref<1x3xf32, #tpu.memory_space<vmem>>, %arg7: memref<2x3xf32, #tpu.memory_space<vmem>>) attributes {dimension_semantics = [#tpu.dimension_semantics<parallel>], iteration_bounds = array<i64: 1>, scalar_prefetch = 0 : i64, scratch_operands = 0 : i64, tpu.core_type = #tpu.core_type<tc>, window_params = [{transform_indices = @transform_0, window_bounds = array<i64: 1, 16, 13>}, {pipeline_mode = #tpu.pipeline_mode<synchronous>, transform_indices = @transform_1, window_bounds = array<i64: 13, 128>}, {pipeline_mode = #tpu.pipeline_mode<synchronous>, transform_indices = @transform_2, window_bounds = array<i64: 32, 128>}, {pipeline_mode = #tpu.pipeline_mode<synchronous>, transform_indices = @transform_3, window_bounds = array<i64: 1, 128>}, {pipeline_mode = #tpu.pipeline_mode<synchronous>, transform_indices = @transform_4, window_bounds = array<i64: 32, 3>}, {pipeline_mode = #tpu.pipeline_mode<synchronous>, transform_indices = @transform_5, window_bounds = array<i64: 1, 3>}, {transform_indices = @transform_6, window_bounds = array<i64: 2, 3>}]} {
    %c0 = arith.constant 0 : index
    %c0_0 = arith.constant 0 : index
    %c0_1 = arith.constant 0 : index
    %0 = vector.load %arg1[%c0, %c0_0, %c0_1] : memref<1x16x13xbf16, #tpu.memory_space<vmem>>, vector<1x16x13xbf16>
    %1 = vector.shape_cast %0 : vector<1x16x13xbf16> to vector<16x13xbf16>
    %c0_2 = arith.constant 0 : index
    %c0_3 = arith.constant 0 : index
    %2 = vector.load %arg2[%c0_2, %c0_3] : memref<13x128xbf16, #tpu.memory_space<vmem>>, vector<13x128xbf16>
    %cst = arith.constant dense<0.000000e+00> : vector<16x128xf32>
    %3 = tpu.matmul %1, %2, %cst {dimension_numbers = #tpu.dot_dimension_numbers<[1], [0], [0], [1], [0, 0, 1, 1], [], []>} : vector<16x13xbf16>, vector<13x128xbf16>, vector<16x128xf32> -> vector<16x128xf32>
    %c0_4 = arith.constant 0 : index
    %c0_5 = arith.constant 0 : index
    %4 = vector.load %arg4[%c0_4, %c0_5] : memref<1x128xf32, #tpu.memory_space<vmem>>, vector<1x128xf32>
    %5 = vector.broadcast %4 : vector<1x128xf32> to vector<16x128xf32>
    %6 = arith.addf %3, %5 : vector<16x128xf32>
    %c0_6 = arith.constant 0 : index
    %c0_7 = arith.constant 0 : index
    %7 = vector.load %arg3[%c0_6, %c0_7] : memref<32x128xbf16, #tpu.memory_space<vmem>>, vector<32x128xbf16>
    %cst_8 = arith.constant 0.000000e+00 : f32
    %8 = vector.broadcast %cst_8 : f32 to vector<2x32xf32>
    %cst_9 = arith.constant 0.000000e+00 : f32
    %9 = vector.broadcast %cst_9 : f32 to vector<2x32xf32>
    %10 = vector.extract_strided_slice %6 {offsets = [0, 0], sizes = [2, 128], strides = [1, 1]} : vector<16x128xf32> to vector<2x128xf32>
    %11 = arith.truncf %8 : vector<2x32xf32> to vector<2x32xbf16>
    %cst_10 = arith.constant dense<0.000000e+00> : vector<2x128xf32>
    %12 = tpu.matmul %11, %7, %cst_10 {dimension_numbers = #tpu.dot_dimension_numbers<[1], [0], [0], [1], [0, 0, 1, 1], [], []>} : vector<2x32xbf16>, vector<32x128xbf16>, vector<2x128xf32> -> vector<2x128xf32>
    %13 = arith.addf %10, %12 : vector<2x128xf32>
    %14 = arith.negf %13 : vector<2x128xf32>
    %15 = math.exp %14 : vector<2x128xf32>
    %cst_11 = arith.constant 1.000000e+00 : f32
    %16 = vector.broadcast %cst_11 : f32 to vector<2x128xf32>
    %17 = arith.addf %16, %15 : vector<2x128xf32>
    %18 = arith.divf %16, %17 : vector<2x128xf32>
    %19 = math.tanh %13 : vector<2x128xf32>
    %20 = vector.extract_strided_slice %18 {offsets = [0, 0], sizes = [2, 32], strides = [1, 1]} : vector<2x128xf32> to vector<2x32xf32>
    %21 = vector.extract_strided_slice %18 {offsets = [0, 32], sizes = [2, 32], strides = [1, 1]} : vector<2x128xf32> to vector<2x32xf32>
    %22 = vector.extract_strided_slice %19 {offsets = [0, 64], sizes = [2, 32], strides = [1, 1]} : vector<2x128xf32> to vector<2x32xf32>
    %23 = vector.extract_strided_slice %18 {offsets = [0, 96], sizes = [2, 32], strides = [1, 1]} : vector<2x128xf32> to vector<2x32xf32>
    %24 = arith.mulf %21, %9 : vector<2x32xf32>
    %25 = arith.mulf %20, %22 : vector<2x32xf32>
    %26 = arith.addf %24, %25 : vector<2x32xf32>
    %27 = math.tanh %26 : vector<2x32xf32>
    %28 = arith.mulf %23, %27 : vector<2x32xf32>
    %29 = vector.extract_strided_slice %6 {offsets = [2, 0], sizes = [2, 128], strides = [1, 1]} : vector<16x128xf32> to vector<2x128xf32>
    %30 = arith.truncf %28 : vector<2x32xf32> to vector<2x32xbf16>
    %cst_12 = arith.constant dense<0.000000e+00> : vector<2x128xf32>
    %31 = tpu.matmul %30, %7, %cst_12 {dimension_numbers = #tpu.dot_dimension_numbers<[1], [0], [0], [1], [0, 0, 1, 1], [], []>} : vector<2x32xbf16>, vector<32x128xbf16>, vector<2x128xf32> -> vector<2x128xf32>
    %32 = arith.addf %29, %31 : vector<2x128xf32>
    %33 = arith.negf %32 : vector<2x128xf32>
    %34 = math.exp %33 : vector<2x128xf32>
    %cst_13 = arith.constant 1.000000e+00 : f32
    %35 = vector.broadcast %cst_13 : f32 to vector<2x128xf32>
    %36 = arith.addf %35, %34 : vector<2x128xf32>
    %37 = arith.divf %35, %36 : vector<2x128xf32>
    %38 = math.tanh %32 : vector<2x128xf32>
    %39 = vector.extract_strided_slice %37 {offsets = [0, 0], sizes = [2, 32], strides = [1, 1]} : vector<2x128xf32> to vector<2x32xf32>
    %40 = vector.extract_strided_slice %37 {offsets = [0, 32], sizes = [2, 32], strides = [1, 1]} : vector<2x128xf32> to vector<2x32xf32>
    %41 = vector.extract_strided_slice %38 {offsets = [0, 64], sizes = [2, 32], strides = [1, 1]} : vector<2x128xf32> to vector<2x32xf32>
    %42 = vector.extract_strided_slice %37 {offsets = [0, 96], sizes = [2, 32], strides = [1, 1]} : vector<2x128xf32> to vector<2x32xf32>
    %43 = arith.mulf %40, %26 : vector<2x32xf32>
    %44 = arith.mulf %39, %41 : vector<2x32xf32>
    %45 = arith.addf %43, %44 : vector<2x32xf32>
    %46 = math.tanh %45 : vector<2x32xf32>
    %47 = arith.mulf %42, %46 : vector<2x32xf32>
    %48 = vector.extract_strided_slice %6 {offsets = [4, 0], sizes = [2, 128], strides = [1, 1]} : vector<16x128xf32> to vector<2x128xf32>
    %49 = arith.truncf %47 : vector<2x32xf32> to vector<2x32xbf16>
    %cst_14 = arith.constant dense<0.000000e+00> : vector<2x128xf32>
    %50 = tpu.matmul %49, %7, %cst_14 {dimension_numbers = #tpu.dot_dimension_numbers<[1], [0], [0], [1], [0, 0, 1, 1], [], []>} : vector<2x32xbf16>, vector<32x128xbf16>, vector<2x128xf32> -> vector<2x128xf32>
    %51 = arith.addf %48, %50 : vector<2x128xf32>
    %52 = arith.negf %51 : vector<2x128xf32>
    %53 = math.exp %52 : vector<2x128xf32>
    %cst_15 = arith.constant 1.000000e+00 : f32
    %54 = vector.broadcast %cst_15 : f32 to vector<2x128xf32>
    %55 = arith.addf %54, %53 : vector<2x128xf32>
    %56 = arith.divf %54, %55 : vector<2x128xf32>
    %57 = math.tanh %51 : vector<2x128xf32>
    %58 = vector.extract_strided_slice %56 {offsets = [0, 0], sizes = [2, 32], strides = [1, 1]} : vector<2x128xf32> to vector<2x32xf32>
    %59 = vector.extract_strided_slice %56 {offsets = [0, 32], sizes = [2, 32], strides = [1, 1]} : vector<2x128xf32> to vector<2x32xf32>
    %60 = vector.extract_strided_slice %57 {offsets = [0, 64], sizes = [2, 32], strides = [1, 1]} : vector<2x128xf32> to vector<2x32xf32>
    %61 = vector.extract_strided_slice %56 {offsets = [0, 96], sizes = [2, 32], strides = [1, 1]} : vector<2x128xf32> to vector<2x32xf32>
    %62 = arith.mulf %59, %45 : vector<2x32xf32>
    %63 = arith.mulf %58, %60 : vector<2x32xf32>
    %64 = arith.addf %62, %63 : vector<2x32xf32>
    %65 = math.tanh %64 : vector<2x32xf32>
    %66 = arith.mulf %61, %65 : vector<2x32xf32>
    %67 = vector.extract_strided_slice %6 {offsets = [6, 0], sizes = [2, 128], strides = [1, 1]} : vector<16x128xf32> to vector<2x128xf32>
    %68 = arith.truncf %66 : vector<2x32xf32> to vector<2x32xbf16>
    %cst_16 = arith.constant dense<0.000000e+00> : vector<2x128xf32>
    %69 = tpu.matmul %68, %7, %cst_16 {dimension_numbers = #tpu.dot_dimension_numbers<[1], [0], [0], [1], [0, 0, 1, 1], [], []>} : vector<2x32xbf16>, vector<32x128xbf16>, vector<2x128xf32> -> vector<2x128xf32>
    %70 = arith.addf %67, %69 : vector<2x128xf32>
    %71 = arith.negf %70 : vector<2x128xf32>
    %72 = math.exp %71 : vector<2x128xf32>
    %cst_17 = arith.constant 1.000000e+00 : f32
    %73 = vector.broadcast %cst_17 : f32 to vector<2x128xf32>
    %74 = arith.addf %73, %72 : vector<2x128xf32>
    %75 = arith.divf %73, %74 : vector<2x128xf32>
    %76 = math.tanh %70 : vector<2x128xf32>
    %77 = vector.extract_strided_slice %75 {offsets = [0, 0], sizes = [2, 32], strides = [1, 1]} : vector<2x128xf32> to vector<2x32xf32>
    %78 = vector.extract_strided_slice %75 {offsets = [0, 32], sizes = [2, 32], strides = [1, 1]} : vector<2x128xf32> to vector<2x32xf32>
    %79 = vector.extract_strided_slice %76 {offsets = [0, 64], sizes = [2, 32], strides = [1, 1]} : vector<2x128xf32> to vector<2x32xf32>
    %80 = vector.extract_strided_slice %75 {offsets = [0, 96], sizes = [2, 32], strides = [1, 1]} : vector<2x128xf32> to vector<2x32xf32>
    %81 = arith.mulf %78, %64 : vector<2x32xf32>
    %82 = arith.mulf %77, %79 : vector<2x32xf32>
    %83 = arith.addf %81, %82 : vector<2x32xf32>
    %84 = math.tanh %83 : vector<2x32xf32>
    %85 = arith.mulf %80, %84 : vector<2x32xf32>
    %86 = vector.extract_strided_slice %6 {offsets = [8, 0], sizes = [2, 128], strides = [1, 1]} : vector<16x128xf32> to vector<2x128xf32>
    %87 = arith.truncf %85 : vector<2x32xf32> to vector<2x32xbf16>
    %cst_18 = arith.constant dense<0.000000e+00> : vector<2x128xf32>
    %88 = tpu.matmul %87, %7, %cst_18 {dimension_numbers = #tpu.dot_dimension_numbers<[1], [0], [0], [1], [0, 0, 1, 1], [], []>} : vector<2x32xbf16>, vector<32x128xbf16>, vector<2x128xf32> -> vector<2x128xf32>
    %89 = arith.addf %86, %88 : vector<2x128xf32>
    %90 = arith.negf %89 : vector<2x128xf32>
    %91 = math.exp %90 : vector<2x128xf32>
    %cst_19 = arith.constant 1.000000e+00 : f32
    %92 = vector.broadcast %cst_19 : f32 to vector<2x128xf32>
    %93 = arith.addf %92, %91 : vector<2x128xf32>
    %94 = arith.divf %92, %93 : vector<2x128xf32>
    %95 = math.tanh %89 : vector<2x128xf32>
    %96 = vector.extract_strided_slice %94 {offsets = [0, 0], sizes = [2, 32], strides = [1, 1]} : vector<2x128xf32> to vector<2x32xf32>
    %97 = vector.extract_strided_slice %94 {offsets = [0, 32], sizes = [2, 32], strides = [1, 1]} : vector<2x128xf32> to vector<2x32xf32>
    %98 = vector.extract_strided_slice %95 {offsets = [0, 64], sizes = [2, 32], strides = [1, 1]} : vector<2x128xf32> to vector<2x32xf32>
    %99 = vector.extract_strided_slice %94 {offsets = [0, 96], sizes = [2, 32], strides = [1, 1]} : vector<2x128xf32> to vector<2x32xf32>
    %100 = arith.mulf %97, %83 : vector<2x32xf32>
    %101 = arith.mulf %96, %98 : vector<2x32xf32>
    %102 = arith.addf %100, %101 : vector<2x32xf32>
    %103 = math.tanh %102 : vector<2x32xf32>
    %104 = arith.mulf %99, %103 : vector<2x32xf32>
    %105 = vector.extract_strided_slice %6 {offsets = [10, 0], sizes = [2, 128], strides = [1, 1]} : vector<16x128xf32> to vector<2x128xf32>
    %106 = arith.truncf %104 : vector<2x32xf32> to vector<2x32xbf16>
    %cst_20 = arith.constant dense<0.000000e+00> : vector<2x128xf32>
    %107 = tpu.matmul %106, %7, %cst_20 {dimension_numbers = #tpu.dot_dimension_numbers<[1], [0], [0], [1], [0, 0, 1, 1], [], []>} : vector<2x32xbf16>, vector<32x128xbf16>, vector<2x128xf32> -> vector<2x128xf32>
    %108 = arith.addf %105, %107 : vector<2x128xf32>
    %109 = arith.negf %108 : vector<2x128xf32>
    %110 = math.exp %109 : vector<2x128xf32>
    %cst_21 = arith.constant 1.000000e+00 : f32
    %111 = vector.broadcast %cst_21 : f32 to vector<2x128xf32>
    %112 = arith.addf %111, %110 : vector<2x128xf32>
    %113 = arith.divf %111, %112 : vector<2x128xf32>
    %114 = math.tanh %108 : vector<2x128xf32>
    %115 = vector.extract_strided_slice %113 {offsets = [0, 0], sizes = [2, 32], strides = [1, 1]} : vector<2x128xf32> to vector<2x32xf32>
    %116 = vector.extract_strided_slice %113 {offsets = [0, 32], sizes = [2, 32], strides = [1, 1]} : vector<2x128xf32> to vector<2x32xf32>
    %117 = vector.extract_strided_slice %114 {offsets = [0, 64], sizes = [2, 32], strides = [1, 1]} : vector<2x128xf32> to vector<2x32xf32>
    %118 = vector.extract_strided_slice %113 {offsets = [0, 96], sizes = [2, 32], strides = [1, 1]} : vector<2x128xf32> to vector<2x32xf32>
    %119 = arith.mulf %116, %102 : vector<2x32xf32>
    %120 = arith.mulf %115, %117 : vector<2x32xf32>
    %121 = arith.addf %119, %120 : vector<2x32xf32>
    %122 = math.tanh %121 : vector<2x32xf32>
    %123 = arith.mulf %118, %122 : vector<2x32xf32>
    %124 = vector.extract_strided_slice %6 {offsets = [12, 0], sizes = [2, 128], strides = [1, 1]} : vector<16x128xf32> to vector<2x128xf32>
    %125 = arith.truncf %123 : vector<2x32xf32> to vector<2x32xbf16>
    %cst_22 = arith.constant dense<0.000000e+00> : vector<2x128xf32>
    %126 = tpu.matmul %125, %7, %cst_22 {dimension_numbers = #tpu.dot_dimension_numbers<[1], [0], [0], [1], [0, 0, 1, 1], [], []>} : vector<2x32xbf16>, vector<32x128xbf16>, vector<2x128xf32> -> vector<2x128xf32>
    %127 = arith.addf %124, %126 : vector<2x128xf32>
    %128 = arith.negf %127 : vector<2x128xf32>
    %129 = math.exp %128 : vector<2x128xf32>
    %cst_23 = arith.constant 1.000000e+00 : f32
    %130 = vector.broadcast %cst_23 : f32 to vector<2x128xf32>
    %131 = arith.addf %130, %129 : vector<2x128xf32>
    %132 = arith.divf %130, %131 : vector<2x128xf32>
    %133 = math.tanh %127 : vector<2x128xf32>
    %134 = vector.extract_strided_slice %132 {offsets = [0, 0], sizes = [2, 32], strides = [1, 1]} : vector<2x128xf32> to vector<2x32xf32>
    %135 = vector.extract_strided_slice %132 {offsets = [0, 32], sizes = [2, 32], strides = [1, 1]} : vector<2x128xf32> to vector<2x32xf32>
    %136 = vector.extract_strided_slice %133 {offsets = [0, 64], sizes = [2, 32], strides = [1, 1]} : vector<2x128xf32> to vector<2x32xf32>
    %137 = vector.extract_strided_slice %132 {offsets = [0, 96], sizes = [2, 32], strides = [1, 1]} : vector<2x128xf32> to vector<2x32xf32>
    %138 = arith.mulf %135, %121 : vector<2x32xf32>
    %139 = arith.mulf %134, %136 : vector<2x32xf32>
    %140 = arith.addf %138, %139 : vector<2x32xf32>
    %141 = math.tanh %140 : vector<2x32xf32>
    %142 = arith.mulf %137, %141 : vector<2x32xf32>
    %143 = vector.extract_strided_slice %6 {offsets = [14, 0], sizes = [2, 128], strides = [1, 1]} : vector<16x128xf32> to vector<2x128xf32>
    %144 = arith.truncf %142 : vector<2x32xf32> to vector<2x32xbf16>
    %cst_24 = arith.constant dense<0.000000e+00> : vector<2x128xf32>
    %145 = tpu.matmul %144, %7, %cst_24 {dimension_numbers = #tpu.dot_dimension_numbers<[1], [0], [0], [1], [0, 0, 1, 1], [], []>} : vector<2x32xbf16>, vector<32x128xbf16>, vector<2x128xf32> -> vector<2x128xf32>
    %146 = arith.addf %143, %145 : vector<2x128xf32>
    %147 = arith.negf %146 : vector<2x128xf32>
    %148 = math.exp %147 : vector<2x128xf32>
    %cst_25 = arith.constant 1.000000e+00 : f32
    %149 = vector.broadcast %cst_25 : f32 to vector<2x128xf32>
    %150 = arith.addf %149, %148 : vector<2x128xf32>
    %151 = arith.divf %149, %150 : vector<2x128xf32>
    %152 = math.tanh %146 : vector<2x128xf32>
    %153 = vector.extract_strided_slice %151 {offsets = [0, 0], sizes = [2, 32], strides = [1, 1]} : vector<2x128xf32> to vector<2x32xf32>
    %154 = vector.extract_strided_slice %151 {offsets = [0, 32], sizes = [2, 32], strides = [1, 1]} : vector<2x128xf32> to vector<2x32xf32>
    %155 = vector.extract_strided_slice %152 {offsets = [0, 64], sizes = [2, 32], strides = [1, 1]} : vector<2x128xf32> to vector<2x32xf32>
    %156 = vector.extract_strided_slice %151 {offsets = [0, 96], sizes = [2, 32], strides = [1, 1]} : vector<2x128xf32> to vector<2x32xf32>
    %157 = arith.mulf %154, %140 : vector<2x32xf32>
    %158 = arith.mulf %153, %155 : vector<2x32xf32>
    %159 = arith.addf %157, %158 : vector<2x32xf32>
    %160 = math.tanh %159 : vector<2x32xf32>
    %161 = arith.mulf %156, %160 : vector<2x32xf32>
    %162 = arith.truncf %161 : vector<2x32xf32> to vector<2x32xbf16>
    %c0_26 = arith.constant 0 : index
    %c0_27 = arith.constant 0 : index
    %163 = vector.load %arg5[%c0_26, %c0_27] : memref<32x3xbf16, #tpu.memory_space<vmem>>, vector<32x3xbf16>
    %cst_28 = arith.constant dense<0.000000e+00> : vector<2x3xf32>
    %164 = tpu.matmul %162, %163, %cst_28 {dimension_numbers = #tpu.dot_dimension_numbers<[1], [0], [0], [1], [0, 0, 1, 1], [], []>} : vector<2x32xbf16>, vector<32x3xbf16>, vector<2x3xf32> -> vector<2x3xf32>
    %c0_29 = arith.constant 0 : index
    %c0_30 = arith.constant 0 : index
    %165 = vector.load %arg6[%c0_29, %c0_30] : memref<1x3xf32, #tpu.memory_space<vmem>>, vector<1x3xf32>
    %166 = vector.broadcast %165 : vector<1x3xf32> to vector<2x3xf32>
    %167 = arith.addf %164, %166 : vector<2x3xf32>
    %c0_31 = arith.constant 0 : index
    %c0_32 = arith.constant 0 : index
    %168 = vector.load %arg7[%c0_31, %c0_32] : memref<2x3xf32, #tpu.memory_space<vmem>>, vector<2x3xf32>
    tpu.vector_store %arg7[%c0_31, %c0_32], %167 {strides = array<i32>} : memref<2x3xf32, #tpu.memory_space<vmem>>, vector<2x3xf32>,
    return
  }
  func.func @transform_0(%arg0: i32) -> (i32, i32, i32) {
    %c0_i32 = arith.constant 0 : i32
    %c0_i32_0 = arith.constant 0 : i32
    %c0_i32_1 = arith.constant 0 : i32
    return %arg0, %c0_i32, %c0_i32_0 : i32, i32, i32
  }
  func.func @transform_1(%arg0: i32) -> (i32, i32) {
    %c0_i32 = arith.constant 0 : i32
    %c0_i32_0 = arith.constant 0 : i32
    %c0_i32_1 = arith.constant 0 : i32
    return %c0_i32, %c0_i32_0 : i32, i32
  }
  func.func @transform_2(%arg0: i32) -> (i32, i32) {
    %c0_i32 = arith.constant 0 : i32
    %c0_i32_0 = arith.constant 0 : i32
    %c0_i32_1 = arith.constant 0 : i32
    return %c0_i32, %c0_i32_0 : i32, i32
  }
  func.func @transform_3(%arg0: i32) -> (i32, i32) {
    %c0_i32 = arith.constant 0 : i32
    %c0_i32_0 = arith.constant 0 : i32
    %c0_i32_1 = arith.constant 0 : i32
    return %c0_i32, %c0_i32_0 : i32, i32
  }
  func.func @transform_4(%arg0: i32) -> (i32, i32) {
    %c0_i32 = arith.constant 0 : i32
    %c0_i32_0 = arith.constant 0 : i32
    %c0_i32_1 = arith.constant 0 : i32
    return %c0_i32, %c0_i32_0 : i32, i32
  }
  func.func @transform_5(%arg0: i32) -> (i32, i32) {
    %c0_i32 = arith.constant 0 : i32
    %c0_i32_0 = arith.constant 0 : i32
    %c0_i32_1 = arith.constant 0 : i32
    return %c0_i32, %c0_i32_0 : i32, i32
  }
  func.func @transform_6(%arg0: i32) -> (i32, i32) {
    %c0_i32 = arith.constant 0 : i32
    %c0_i32_0 = arith.constant 0 : i32
    return %arg0, %c0_i32 : i32, i32
  }
}

</mosaic_0001>

<llo_original>
// kernel: tpu_custom_call.1
$region0: #{tpu_custom_call.1}
  #allocation0 [shape = 'u32[]', space=smem, size = 0x4, offset = 0x4, fixed_abs, tag = 'smem constant byte address 0x4 - core index']
  #allocation1 [shape = 'u32[144,128]{1,0:T(1,128)}', space=vmem, size = 0x12000, scoped, tag = 'internal scratch']
  %s0 = inlined_call_operand.vmem [shape: bf16[1,16,13], index: 0, kind: input, shape index: {}]
  %s1 = inlined_call_operand.hbm [shape: bf16[13,128], index: 1, kind: input, shape index: {}]
  %s2 = inlined_call_operand.vmem [shape: bf16[32,128], index: 2, kind: input, shape index: {}]
  %s3 = inlined_call_operand.vmem [shape: f32[1,128], index: 3, kind: input, shape index: {}]
  %s4 = inlined_call_operand.vmem [shape: bf16[32,3], index: 4, kind: input, shape index: {}]
  %s5 = inlined_call_operand.vmem [shape: f32[1,3], index: 5, kind: input, shape index: {}]
  %s6 = inlined_call_operand.hbm [shape: f32[2,3], index: 6, kind: output, shape index: {}]
  %s7 = sld [smem:[#allocation0]]
  $region38: #{tpu_custom_call.1} parent=0
    _
  %s9 = ssub.s32 1, %s7
  %s10 = scalar_select 0, %s9, %s7
  $region1: #{tpu_custom_call.1} parent=0
    #allocation2 [shape = 'u8[4096]{0}', space=vmem, size = 0x1000, scoped, tag = 'input window, operand 1, single buffered']
    #allocation3 [shape = 's32[1]{0}', space=sflag, size = 0x4, scoped, tag = 'scoped memory for tpu_custom_call.1']
    #allocation4 [shape = 's32[1]{0}', space=sflag, size = 0x4, scoped, tag = 'scoped memory for tpu_custom_call.1']
    #allocation5 [shape = 'u8[1024]{0}', space=vmem, size = 0x400, scoped, tag = 'output window, operand 0, single buffered']
    %11 = vsyncpa [#allocation3], 0
    %12 = vsyncpa [#allocation4], 0
    // Predicated region
    $region2: #{tpu_custom_call.1} parent=1 // pred_check
      _
    $region3: #{tpu_custom_call.1} parent=1 // pred_check_branch
      %14 = sbr.rel (0) target = $region5
    $region4: #{tpu_custom_call.1} parent=1 // pred_region
      _
    $region5: #{tpu_custom_call.1} parent=1 // pred_fallthru
      _
    // Predicated region
    $region6: #{tpu_custom_call.1} parent=1 // pred_check
      _
    $region7: #{tpu_custom_call.1} parent=1 // pred_check_branch
      %16 = sbr.rel (0) target = $region9
    $region8: #{tpu_custom_call.1} parent=1 // pred_region
      %s18 = ssub.s32 128, 128
      %19 = vsyncadd [#allocation3], %s18
      %s20 = sshll.u32 [#allocation2], 4
      %s21 = int_to_ptr.vmem [resolvable:$true] %s20
      %26 = dma.hbm_to_vmem [thread:$0]  %s1, 128, %s21, [#allocation3], 64, 64, 4
    $region9: #{tpu_custom_call.1} parent=1 // pred_fallthru
      _
    // Predicated region
    $region10: #{tpu_custom_call.1} parent=1 // pred_check
      _
    $region11: #{tpu_custom_call.1} parent=1 // pred_check_branch
      %28 = sbr.rel (0) target = $region13
    $region12: #{tpu_custom_call.1} parent=1 // pred_region
      _
    $region13: #{tpu_custom_call.1} parent=1 // pred_fallthru
      _
    // Predicated region
    $region14: #{tpu_custom_call.1} parent=1 // pred_check
      _
    $region15: #{tpu_custom_call.1} parent=1 // pred_check_branch
      %30 = sbr.rel (0) target = $region17
    $region16: #{tpu_custom_call.1} parent=1 // pred_region
      _
    $region17: #{tpu_custom_call.1} parent=1 // pred_fallthru
      _
    // Predicated region
    $region18: #{tpu_custom_call.1} parent=1 // pred_check
      _
    $region19: #{tpu_custom_call.1} parent=1 // pred_check_branch
      %32 = sbr.rel (0) target = $region21
    $region20: #{tpu_custom_call.1} parent=1 // pred_region
      _
    $region21: #{tpu_custom_call.1} parent=1 // pred_fallthru
      _
    // Predicated region
    $region22: #{tpu_custom_call.1} parent=1 // pred_check
      _
    $region23: #{tpu_custom_call.1} parent=1 // pred_check_branch
      %34 = sbr.rel (0) target = $region25
    $region24: #{tpu_custom_call.1} parent=1 // pred_region
      _
    $region25: #{tpu_custom_call.1} parent=1 // pred_fallthru
      _
    // Predicated region
    $region26: #{tpu_custom_call.1} parent=1 // pred_check
      _
    $region27: #{tpu_custom_call.1} parent=1 // pred_check_branch
      %36 = sbr.rel (0) target = $region29
    $region28: #{tpu_custom_call.1} parent=1 // pred_region
      %37 = dma.done [#allocation3], 128
    $region29: #{tpu_custom_call.1} parent=1 // pred_fallthru
      _
    %v39 = vld [vmem:[%s0] sm:$0xf]
    %v40 = vld [vmem:[%s0 + $0x4] sm:$0xf]
    %v41 = vld [vmem:[#allocation2] sm:$0xf]
    %v42 = vld [vmem:[#allocation2 + $0x4] sm:$0x7]
    %v43 = vld [vmem:[%s3] sm:$0x1]
    %v45 = vlaneseq
    %v46 = vshrl.u32 %v45, 7
    %v47 = vsub.s32 0, %v46
    %v48 = vrot.slane %v43, %v47
    %v52 = vunpack.c.l.b16 %v39
    %v53 = vunpack.c.l.b16 %v40
    %v54 = vpack.c.b16 %v53, %v52
    %v57 = vunpack.c.l.b16 %v41
    %v58 = vunpack.c.l.b16 %v42
    %v59 = vpack.c.b16 %v58, %v57
    %vm60 = vcmask 105472
    %v62 = vsel %vm60, %v54, 0
    %vm64 = vcmask 1045504
    %vm65 = vcmask 1046528
    %v66 = vsel %vm64, 4294967295, 65535
    %v67 = vsel %vm65, %v66, 0
    %v69 = vand.u32 %v59, %v67
    %71 = vmatprep.subr.bf16.mxu0 0
    %72 = vmatpush1.bf16.msra.mxu0 %v69
    %73 = vmatprep.subr.bf16.mxu0 0
    %74 = vmatpush1.bf16.msra.mxu0 0
    %75 = vmatprep.subr.bf16.mxu0 0
    %76 = vmatpush1.bf16.msra.mxu0 0
    %77 = vmatprep.subr.bf16.mxu0 0
    %78 = vmatpush1.bf16.msra.mxu0 0
    %79 = vmatprep.subr.bf16.mxu0 0
    %80 = vmatpush1.bf16.msra.mxu0 0
    %81 = vmatprep.subr.bf16.mxu0 0
    %82 = vmatpush1.bf16.msra.mxu0 0
    %83 = vmatprep.subr.bf16.mxu0 0
    %84 = vmatpush1.bf16.msra.mxu0 0
    %85 = vmatprep.subr.bf16.mxu0 0
    %86 = vmatpush1.bf16.msra.mxu0 0
    %87 = vmatprep.subr.bf16.mxu0 0
    %88 = vmatpush1.bf16.msra.mxu0 0
    %89 = vmatprep.subr.bf16.mxu0 0
    %90 = vmatpush1.bf16.msra.mxu0 0
    %91 = vmatprep.subr.bf16.mxu0 0
    %92 = vmatpush1.bf16.msra.mxu0 0
    %93 = vmatprep.subr.bf16.mxu0 0
    %94 = vmatpush1.bf16.msra.mxu0 0
    %95 = vmatprep.subr.bf16.mxu0 0
    %96 = vmatpush1.bf16.msra.mxu0 0
    %97 = vmatprep.subr.bf16.mxu0 0
    %98 = vmatpush1.bf16.msra.mxu0 0
    %99 = vmatprep.subr.bf16.mxu0 0
    %100 = vmatpush1.bf16.msra.mxu0 0
    %101 = vmatprep.subr.bf16.mxu0 0
    %102 = vmatpush1.bf16.msra.mxu0 0
    %103 = vmatprep.mubr.bf16.mxu0 0
    %104 = vmatmul.mubr.bf16.gmra.mrb[0].mxu0 %v62
    %v105 = vpop.f32.mrb[0].mxu0
    %v106 = vadd.f32 %v48, %v105
    %v107 = vpop.f32.mrb[0].mxu0
    %v108 = vpop.f32.mrb[0].mxu0
    %v109 = vadd.f32 %v48, %v108
    %v110 = vpop.f32.mrb[0].mxu0
    %111 = vdwg.mxu0
    %v112 = vld [vmem:[%s2] sm:$0xf]
    %v113 = vld [vmem:[%s2 + $0x4] sm:$0xf]
    %v114 = vld [vmem:[%s2 + $0x8] sm:$0xf]
    %v115 = vld [vmem:[%s2 + $0xc] sm:$0xf]
    %v120 = vunpack.c.l.b16 %v112
    %v121 = vunpack.c.l.b16 %v113
    %v122 = vunpack.c.l.b16 %v114
    %v123 = vunpack.c.l.b16 %v115
    %v124 = vpack.c.b16 %v121, %v120
    %v125 = vpack.c.b16 %v123, %v122
    %vm128 = vcmask 261120
    %v130 = vsel %vm128, 0, 0
    %132 = vmatprep.subr.bf16.mxu0 0
    %133 = vmatpush1.bf16.msra.mxu0 %v124
    %134 = vmatprep.subr.bf16.mxu0 0
    %135 = vmatpush1.bf16.msra.mxu0 %v125
    %136 = vmatprep.subr.bf16.mxu0 0
    %137 = vmatpush1.bf16.msra.mxu0 0
    %138 = vmatprep.subr.bf16.mxu0 0
    %139 = vmatpush1.bf16.msra.mxu0 0
    %140 = vmatprep.subr.bf16.mxu0 0
    %141 = vmatpush1.bf16.msra.mxu0 0
    %142 = vmatprep.subr.bf16.mxu0 0
    %143 = vmatpush1.bf16.msra.mxu0 0
    %144 = vmatprep.subr.bf16.mxu0 0
    %145 = vmatpush1.bf16.msra.mxu0 0
    %146 = vmatprep.subr.bf16.mxu0 0
    %147 = vmatpush1.bf16.msra.mxu0 0
    %148 = vmatprep.subr.bf16.mxu0 0
    %149 = vmatpush1.bf16.msra.mxu0 0
    %150 = vmatprep.subr.bf16.mxu0 0
    %151 = vmatpush1.bf16.msra.mxu0 0
    %152 = vmatprep.subr.bf16.mxu0 0
    %153 = vmatpush1.bf16.msra.mxu0 0
    %154 = vmatprep.subr.bf16.mxu0 0
    %155 = vmatpush1.bf16.msra.mxu0 0
    %156 = vmatprep.subr.bf16.mxu0 0
    %157 = vmatpush1.bf16.msra.mxu0 0
    %158 = vmatprep.subr.bf16.mxu0 0
    %159 = vmatpush1.bf16.msra.mxu0 0
    %160 = vmatprep.subr.bf16.mxu0 0
    %161 = vmatpush1.bf16.msra.mxu0 0
    %162 = vmatprep.subr.bf16.mxu0 0
    %163 = vmatpush1.bf16.msra.mxu0 0
    %164 = vmatprep.mubr.bf16.mxu0 0
    %165 = vmatmul.mubr.bf16.gmra.mrb[0].mxu0 %v130
    %v166 = vpop.f32.mrb[0].mxu0
    %v167 = vadd.f32 0.0, %v166
    %v168 = vpop.f32.mrb[0].mxu0
    %v169 = vpop.f32.mrb[0].mxu0
    %v170 = vpop.f32.mrb[0].mxu0
    %171 = vdwg.mxu0
    %v172 = vadd.f32 %v106, %v167
    %v173 = vxor.u32 %v172, 2147483648
    %v174 = vmul.f32 %v173, 1.442695
    %v175 = vpow.pop %v174
    %v176 = vadd.f32 %v175, 1.0
    %v177 = vrcp.pop %v176
    %v178 = vmul.f32 1.0, %v177
    %v179 = vtanh.pop %v172
    %v180 = vmul.f32 %v178, 0.0
    %182 = vrot.lane.b32.xlu0 %v179, 64
    %v183 = vpop.permute.xlu0 %182
    %v185 = vmul.f32 %v178, %v183
    %187 = vrot.lane.b32.xlu0 %v185, 32
    %v188 = vpop.permute.xlu0 %187
    %v190 = vadd.f32 %v180, %v188
    %v191 = vtanh.pop %v190
    %193 = vrot.lane.b32.xlu0 %v191, 64
    %v194 = vpop.permute.xlu0 %193
    %v196 = vmul.f32 %v178, %v194
    %v197 = vpack.c.bf16 %v196, %v196
    %199 = vrot.lane.b32.xlu0 %v197, 32
    %v200 = vpop.permute.xlu0 %199
    %v202 = vsel %vm128, %v200, 0
    %204 = vmatprep.subr.bf16.mxu0 0
    %205 = vmatpush1.bf16.msra.mxu0 %v124
    %206 = vmatprep.subr.bf16.mxu0 0
    %207 = vmatpush1.bf16.msra.mxu0 %v125
    %208 = vmatprep.subr.bf16.mxu0 0
    %209 = vmatpush1.bf16.msra.mxu0 0
    %210 = vmatprep.subr.bf16.mxu0 0
    %211 = vmatpush1.bf16.msra.mxu0 0
    %212 = vmatprep.subr.bf16.mxu0 0
    %213 = vmatpush1.bf16.msra.mxu0 0
    %214 = vmatprep.subr.bf16.mxu0 0
    %215 = vmatpush1.bf16.msra.mxu0 0
    %216 = vmatprep.subr.bf16.mxu0 0
    %217 = vmatpush1.bf16.msra.mxu0 0
    %218 = vmatprep.subr.bf16.mxu0 0
    %219 = vmatpush1.bf16.msra.mxu0 0
    %220 = vmatprep.subr.bf16.mxu0 0
    %221 = vmatpush1.bf16.msra.mxu0 0
    %222 = vmatprep.subr.bf16.mxu0 0
    %223 = vmatpush1.bf16.msra.mxu0 0
    %224 = vmatprep.subr.bf16.mxu0 0
    %225 = vmatpush1.bf16.msra.mxu0 0
    %226 = vmatprep.subr.bf16.mxu0 0
    %227 = vmatpush1.bf16.msra.mxu0 0
    %228 = vmatprep.subr.bf16.mxu0 0
    %229 = vmatpush1.bf16.msra.mxu0 0
    %230 = vmatprep.subr.bf16.mxu0 0
    %231 = vmatpush1.bf16.msra.mxu0 0
    %232 = vmatprep.subr.bf16.mxu0 0
    %233 = vmatpush1.bf16.msra.mxu0 0
    %234 = vmatprep.subr.bf16.mxu0 0
    %235 = vmatpush1.bf16.msra.mxu0 0
    %236 = vmatprep.mubr.bf16.mxu0 0
    %237 = vmatmul.mubr.bf16.gmra.mrb[0].mxu0 %v202
    %v238 = vpop.f32.mrb[0].mxu0
    %v239 = vadd.f32 0.0, %v238
    %v240 = vpop.f32.mrb[0].mxu0
    %v241 = vpop.f32.mrb[0].mxu0
    %v242 = vpop.f32.mrb[0].mxu0
    %243 = vdwg.mxu0
    %v245 = vrot.slane %v239, 6
    %v247 = vadd.f32 %v106, %v245
    %v248 = vxor.u32 %v247, 2147483648
    %v249 = vmul.f32 %v248, 1.442695
    %v250 = vpow.pop %v249
    %v251 = vadd.f32 %v250, 1.0
    %v252 = vrcp.pop %v251
    %v253 = vmul.f32 1.0, %v252
    %v254 = vtanh.pop %v247
    %v256 = vrot.slane %v190, 6
    %v258 = vmul.f32 %v253, %v256
    %260 = vrot.lane.b32.xlu0 %v254, 64
    %v261 = vpop.permute.xlu0 %260
    %v263 = vmul.f32 %v253, %v261
    %265 = vrot.lane.b32.xlu0 %v263, 32
    %v266 = vpop.permute.xlu0 %265
    %v268 = vadd.f32 %v258, %v266
    %v269 = vtanh.pop %v268
    %271 = vrot.lane.b32.xlu0 %v269, 64
    %v272 = vpop.permute.xlu0 %271
    %v274 = vmul.f32 %v253, %v272
    %v275 = vpack.c.bf16 %v274, %v274
    %v277 = vrot.slane %v275, 1
    %278 = vrot.lane.b32.xlu0 %v277, 32
    %v279 = vpop.permute.xlu0 %278
    %v281 = vsel %vm128, %v279, 0
    %283 = vmatprep.subr.bf16.mxu0 0
    %284 = vmatpush1.bf16.msra.mxu0 %v124
    %285 = vmatprep.subr.bf16.mxu0 0
    %286 = vmatpush1.bf16.msra.mxu0 %v125
    %287 = vmatprep.subr.bf16.mxu0 0
    %288 = vmatpush1.bf16.msra.mxu0 0
    %289 = vmatprep.subr.bf16.mxu0 0
    %290 = vmatpush1.bf16.msra.mxu0 0
    %291 = vmatprep.subr.bf16.mxu0 0
    %292 = vmatpush1.bf16.msra.mxu0 0
    %293 = vmatprep.subr.bf16.mxu0 0
    %294 = vmatpush1.bf16.msra.mxu0 0
    %295 = vmatprep.subr.bf16.mxu0 0
    %296 = vmatpush1.bf16.msra.mxu0 0
    %297 = vmatprep.subr.bf16.mxu0 0
    %298 = vmatpush1.bf16.msra.mxu0 0
    %299 = vmatprep.subr.bf16.mxu0 0
    %300 = vmatpush1.bf16.msra.mxu0 0
    %301 = vmatprep.subr.bf16.mxu0 0
    %302 = vmatpush1.bf16.msra.mxu0 0
    %303 = vmatprep.subr.bf16.mxu0 0
    %304 = vmatpush1.bf16.msra.mxu0 0
    %305 = vmatprep.subr.bf16.mxu0 0
    %306 = vmatpush1.bf16.msra.mxu0 0
    %307 = vmatprep.subr.bf16.mxu0 0
    %308 = vmatpush1.bf16.msra.mxu0 0
    %309 = vmatprep.subr.bf16.mxu0 0
    %310 = vmatpush1.bf16.msra.mxu0 0
    %311 = vmatprep.subr.bf16.mxu0 0
    %312 = vmatpush1.bf16.msra.mxu0 0
    %313 = vmatprep.subr.bf16.mxu0 0
    %314 = vmatpush1.bf16.msra.mxu0 0
    %315 = vmatprep.mubr.bf16.mxu0 0
    %316 = vmatmul.mubr.bf16.gmra.mrb[0].mxu0 %v281
    %v317 = vpop.f32.mrb[0].mxu0
    %v318 = vadd.f32 0.0, %v317
    %v319 = vpop.f32.mrb[0].mxu0
    %v320 = vpop.f32.mrb[0].mxu0
    %v321 = vpop.f32.mrb[0].mxu0
    %322 = vdwg.mxu0
    %v324 = vrot.slane %v318, 4
    %v326 = vadd.f32 %v106, %v324
    %v327 = vxor.u32 %v326, 2147483648
    %v328 = vmul.f32 %v327, 1.442695
    %v329 = vpow.pop %v328
    %v330 = vadd.f32 %v329, 1.0
    %v331 = vrcp.pop %v330
    %v332 = vmul.f32 1.0, %v331
    %v333 = vtanh.pop %v326
    %v335 = vrot.slane %v268, 6
    %v337 = vmul.f32 %v332, %v335
    %339 = vrot.lane.b32.xlu0 %v333, 64
    %v340 = vpop.permute.xlu0 %339
    %v342 = vmul.f32 %v332, %v340
    %344 = vrot.lane.b32.xlu0 %v342, 32
    %v345 = vpop.permute.xlu0 %344
    %v347 = vadd.f32 %v337, %v345
    %v348 = vtanh.pop %v347
    %350 = vrot.lane.b32.xlu0 %v348, 64
    %v351 = vpop.permute.xlu0 %350
    %v353 = vmul.f32 %v332, %v351
    %v354 = vpack.c.bf16 %v353, %v353
    %v356 = vrot.slane %v354, 2
    %357 = vrot.lane.b32.xlu0 %v356, 32
    %v358 = vpop.permute.xlu0 %357
    %v360 = vsel %vm128, %v358, 0
    %362 = vmatprep.subr.bf16.mxu0 0
    %363 = vmatpush1.bf16.msra.mxu0 %v124
    %364 = vmatprep.subr.bf16.mxu0 0
    %365 = vmatpush1.bf16.msra.mxu0 %v125
    %366 = vmatprep.subr.bf16.mxu0 0
    %367 = vmatpush1.bf16.msra.mxu0 0
    %368 = vmatprep.subr.bf16.mxu0 0
    %369 = vmatpush1.bf16.msra.mxu0 0
    %370 = vmatprep.subr.bf16.mxu0 0
    %371 = vmatpush1.bf16.msra.mxu0 0
    %372 = vmatprep.subr.bf16.mxu0 0
    %373 = vmatpush1.bf16.msra.mxu0 0
    %374 = vmatprep.subr.bf16.mxu0 0
    %375 = vmatpush1.bf16.msra.mxu0 0
    %376 = vmatprep.subr.bf16.mxu0 0
    %377 = vmatpush1.bf16.msra.mxu0 0
    %378 = vmatprep.subr.bf16.mxu0 0
    %379 = vmatpush1.bf16.msra.mxu0 0
    %380 = vmatprep.subr.bf16.mxu0 0
    %381 = vmatpush1.bf16.msra.mxu0 0
    %382 = vmatprep.subr.bf16.mxu0 0
    %383 = vmatpush1.bf16.msra.mxu0 0
    %384 = vmatprep.subr.bf16.mxu0 0
    %385 = vmatpush1.bf16.msra.mxu0 0
    %386 = vmatprep.subr.bf16.mxu0 0
    %387 = vmatpush1.bf16.msra.mxu0 0
    %388 = vmatprep.subr.bf16.mxu0 0
    %389 = vmatpush1.bf16.msra.mxu0 0
    %390 = vmatprep.subr.bf16.mxu0 0
    %391 = vmatpush1.bf16.msra.mxu0 0
    %392 = vmatprep.subr.bf16.mxu0 0
    %393 = vmatpush1.bf16.msra.mxu0 0
    %394 = vmatprep.mubr.bf16.mxu0 0
    %395 = vmatmul.mubr.bf16.gmra.mrb[0].mxu0 %v360
    %v396 = vpop.f32.mrb[0].mxu0
    %v397 = vadd.f32 0.0, %v396
    %v398 = vpop.f32.mrb[0].mxu0
    %v399 = vpop.f32.mrb[0].mxu0
    %v400 = vpop.f32.mrb[0].mxu0
    %401 = vdwg.mxu0
    %v403 = vrot.slane %v397, 2
    %v405 = vadd.f32 %v106, %v403
    %v406 = vxor.u32 %v405, 2147483648
    %v407 = vmul.f32 %v406, 1.442695
    %v408 = vpow.pop %v407
    %v409 = vadd.f32 %v408, 1.0
    %v410 = vrcp.pop %v409
    %v411 = vmul.f32 1.0, %v410
    %v412 = vtanh.pop %v405
    %v414 = vrot.slane %v347, 6
    %v416 = vmul.f32 %v411, %v414
    %418 = vrot.lane.b32.xlu0 %v412, 64
    %v419 = vpop.permute.xlu0 %418
    %v421 = vmul.f32 %v411, %v419
    %423 = vrot.lane.b32.xlu0 %v421, 32
    %v424 = vpop.permute.xlu0 %423
    %v426 = vadd.f32 %v416, %v424
    %v427 = vtanh.pop %v426
    %429 = vrot.lane.b32.xlu0 %v427, 64
    %v430 = vpop.permute.xlu0 %429
    %v432 = vmul.f32 %v411, %v430
    %v433 = vpack.c.bf16 %v432, %v432
    %v435 = vrot.slane %v433, 3
    %436 = vrot.lane.b32.xlu0 %v435, 32
    %v437 = vpop.permute.xlu0 %436
    %v439 = vsel %vm128, %v437, 0
    %441 = vmatprep.subr.bf16.mxu0 0
    %442 = vmatpush1.bf16.msra.mxu0 %v124
    %443 = vmatprep.subr.bf16.mxu0 0
    %444 = vmatpush1.bf16.msra.mxu0 %v125
    %445 = vmatprep.subr.bf16.mxu0 0
    %446 = vmatpush1.bf16.msra.mxu0 0
    %447 = vmatprep.subr.bf16.mxu0 0
    %448 = vmatpush1.bf16.msra.mxu0 0
    %449 = vmatprep.subr.bf16.mxu0 0
    %450 = vmatpush1.bf16.msra.mxu0 0
    %451 = vmatprep.subr.bf16.mxu0 0
    %452 = vmatpush1.bf16.msra.mxu0 0
    %453 = vmatprep.subr.bf16.mxu0 0
    %454 = vmatpush1.bf16.msra.mxu0 0
    %455 = vmatprep.subr.bf16.mxu0 0
    %456 = vmatpush1.bf16.msra.mxu0 0
    %457 = vmatprep.subr.bf16.mxu0 0
    %458 = vmatpush1.bf16.msra.mxu0 0
    %459 = vmatprep.subr.bf16.mxu0 0
    %460 = vmatpush1.bf16.msra.mxu0 0
    %461 = vmatprep.subr.bf16.mxu0 0
    %462 = vmatpush1.bf16.msra.mxu0 0
    %463 = vmatprep.subr.bf16.mxu0 0
    %464 = vmatpush1.bf16.msra.mxu0 0
    %465 = vmatprep.subr.bf16.mxu0 0
    %466 = vmatpush1.bf16.msra.mxu0 0
    %467 = vmatprep.subr.bf16.mxu0 0
    %468 = vmatpush1.bf16.msra.mxu0 0
    %469 = vmatprep.subr.bf16.mxu0 0
    %470 = vmatpush1.bf16.msra.mxu0 0
    %471 = vmatprep.subr.bf16.mxu0 0
    %472 = vmatpush1.bf16.msra.mxu0 0
    %473 = vmatprep.mubr.bf16.mxu0 0
    %474 = vmatmul.mubr.bf16.gmra.mrb[0].mxu0 %v439
    %v475 = vpop.f32.mrb[0].mxu0
    %v476 = vadd.f32 0.0, %v475
    %v477 = vpop.f32.mrb[0].mxu0
    %v478 = vpop.f32.mrb[0].mxu0
    %v479 = vpop.f32.mrb[0].mxu0
    %480 = vdwg.mxu0
    %v481 = vadd.f32 %v109, %v476
    %v482 = vxor.u32 %v481, 2147483648
    %v483 = vmul.f32 %v482, 1.442695
    %v484 = vpow.pop %v483
    %v485 = vadd.f32 %v484, 1.0
    %v486 = vrcp.pop %v485
    %v487 = vmul.f32 1.0, %v486
    %v488 = vtanh.pop %v481
    %v490 = vrot.slane %v426, 6
    %v492 = vmul.f32 %v487, %v490
    %494 = vrot.lane.b32.xlu0 %v488, 64
    %v495 = vpop.permute.xlu0 %494
    %v497 = vmul.f32 %v487, %v495
    %499 = vrot.lane.b32.xlu0 %v497, 32
    %v500 = vpop.permute.xlu0 %499
    %v502 = vadd.f32 %v492, %v500
    %v503 = vtanh.pop %v502
    %505 = vrot.lane.b32.xlu0 %v503, 64
    %v506 = vpop.permute.xlu0 %505
    %v508 = vmul.f32 %v487, %v506
    %v509 = vpack.c.bf16 %v508, %v508
    %511 = vrot.lane.b32.xlu0 %v509, 32
    %v512 = vpop.permute.xlu0 %511
    %v514 = vsel %vm128, %v512, 0
    %516 = vmatprep.subr.bf16.mxu0 0
    %517 = vmatpush1.bf16.msra.mxu0 %v124
    %518 = vmatprep.subr.bf16.mxu0 0
    %519 = vmatpush1.bf16.msra.mxu0 %v125
    %520 = vmatprep.subr.bf16.mxu0 0
    %521 = vmatpush1.bf16.msra.mxu0 0
    %522 = vmatprep.subr.bf16.mxu0 0
    %523 = vmatpush1.bf16.msra.mxu0 0
    %524 = vmatprep.subr.bf16.mxu0 0
    %525 = vmatpush1.bf16.msra.mxu0 0
    %526 = vmatprep.subr.bf16.mxu0 0
    %527 = vmatpush1.bf16.msra.mxu0 0
    %528 = vmatprep.subr.bf16.mxu0 0
    %529 = vmatpush1.bf16.msra.mxu0 0
    %530 = vmatprep.subr.bf16.mxu0 0
    %531 = vmatpush1.bf16.msra.mxu0 0
    %532 = vmatprep.subr.bf16.mxu0 0
    %533 = vmatpush1.bf16.msra.mxu0 0
    %534 = vmatprep.subr.bf16.mxu0 0
    %535 = vmatpush1.bf16.msra.mxu0 0
    %536 = vmatprep.subr.bf16.mxu0 0
    %537 = vmatpush1.bf16.msra.mxu0 0
    %538 = vmatprep.subr.bf16.mxu0 0
    %539 = vmatpush1.bf16.msra.mxu0 0
    %540 = vmatprep.subr.bf16.mxu0 0
    %541 = vmatpush1.bf16.msra.mxu0 0
    %542 = vmatprep.subr.bf16.mxu0 0
    %543 = vmatpush1.bf16.msra.mxu0 0
    %544 = vmatprep.subr.bf16.mxu0 0
    %545 = vmatpush1.bf16.msra.mxu0 0
    %546 = vmatprep.subr.bf16.mxu0 0
    %547 = vmatpush1.bf16.msra.mxu0 0
    %548 = vmatprep.mubr.bf16.mxu0 0
    %549 = vmatmul.mubr.bf16.gmra.mrb[0].mxu0 %v514
    %v550 = vpop.f32.mrb[0].mxu0
    %v551 = vadd.f32 0.0, %v550
    %v552 = vpop.f32.mrb[0].mxu0
    %v553 = vpop.f32.mrb[0].mxu0
    %v554 = vpop.f32.mrb[0].mxu0
    %555 = vdwg.mxu0
    %v557 = vrot.slane %v551, 6
    %v559 = vadd.f32 %v109, %v557
    %v560 = vxor.u32 %v559, 2147483648
    %v561 = vmul.f32 %v560, 1.442695
    %v562 = vpow.pop %v561
    %v563 = vadd.f32 %v562, 1.0
    %v564 = vrcp.pop %v563
    %v565 = vmul.f32 1.0, %v564
    %v566 = vtanh.pop %v559
    %v568 = vrot.slane %v502, 6
    %v570 = vmul.f32 %v565, %v568
    %572 = vrot.lane.b32.xlu0 %v566, 64
    %v573 = vpop.permute.xlu0 %572
    %v575 = vmul.f32 %v565, %v573
    %577 = vrot.lane.b32.xlu0 %v575, 32
    %v578 = vpop.permute.xlu0 %577
    %v580 = vadd.f32 %v570, %v578
    %v581 = vtanh.pop %v580
    %583 = vrot.lane.b32.xlu0 %v581, 64
    %v584 = vpop.permute.xlu0 %583
    %v586 = vmul.f32 %v565, %v584
    %v587 = vpack.c.bf16 %v586, %v586
    %v589 = vrot.slane %v587, 1
    %590 = vrot.lane.b32.xlu0 %v589, 32
    %v591 = vpop.permute.xlu0 %590
    %v593 = vsel %vm128, %v591, 0
    %595 = vmatprep.subr.bf16.mxu0 0
    %596 = vmatpush1.bf16.msra.mxu0 %v124
    %597 = vmatprep.subr.bf16.mxu0 0
    %598 = vmatpush1.bf16.msra.mxu0 %v125
    %599 = vmatprep.subr.bf16.mxu0 0
    %600 = vmatpush1.bf16.msra.mxu0 0
    %601 = vmatprep.subr.bf16.mxu0 0
    %602 = vmatpush1.bf16.msra.mxu0 0
    %603 = vmatprep.subr.bf16.mxu0 0
    %604 = vmatpush1.bf16.msra.mxu0 0
    %605 = vmatprep.subr.bf16.mxu0 0
    %606 = vmatpush1.bf16.msra.mxu0 0
    %607 = vmatprep.subr.bf16.mxu0 0
    %608 = vmatpush1.bf16.msra.mxu0 0
    %609 = vmatprep.subr.bf16.mxu0 0
    %610 = vmatpush1.bf16.msra.mxu0 0
    %611 = vmatprep.subr.bf16.mxu0 0
    %612 = vmatpush1.bf16.msra.mxu0 0
    %613 = vmatprep.subr.bf16.mxu0 0
    %614 = vmatpush1.bf16.msra.mxu0 0
    %615 = vmatprep.subr.bf16.mxu0 0
    %616 = vmatpush1.bf16.msra.mxu0 0
    %617 = vmatprep.subr.bf16.mxu0 0
    %618 = vmatpush1.bf16.msra.mxu0 0
    %619 = vmatprep.subr.bf16.mxu0 0
    %620 = vmatpush1.bf16.msra.mxu0 0
    %621 = vmatprep.subr.bf16.mxu0 0
    %622 = vmatpush1.bf16.msra.mxu0 0
    %623 = vmatprep.subr.bf16.mxu0 0
    %624 = vmatpush1.bf16.msra.mxu0 0
    %625 = vmatprep.subr.bf16.mxu0 0
    %626 = vmatpush1.bf16.msra.mxu0 0
    %627 = vmatprep.mubr.bf16.mxu0 0
    %628 = vmatmul.mubr.bf16.gmra.mrb[0].mxu0 %v593
    %v629 = vpop.f32.mrb[0].mxu0
    %v630 = vadd.f32 0.0, %v629
    %v631 = vpop.f32.mrb[0].mxu0
    %v632 = vpop.f32.mrb[0].mxu0
    %v633 = vpop.f32.mrb[0].mxu0
    %634 = vdwg.mxu0
    %v636 = vrot.slane %v630, 4
    %v638 = vadd.f32 %v109, %v636
    %v639 = vxor.u32 %v638, 2147483648
    %v640 = vmul.f32 %v639, 1.442695
    %v641 = vpow.pop %v640
    %v642 = vadd.f32 %v641, 1.0
    %v643 = vrcp.pop %v642
    %v644 = vmul.f32 1.0, %v643
    %v645 = vtanh.pop %v638
    %v647 = vrot.slane %v580, 6
    %v649 = vmul.f32 %v644, %v647
    %651 = vrot.lane.b32.xlu0 %v645, 64
    %v652 = vpop.permute.xlu0 %651
    %v654 = vmul.f32 %v644, %v652
    %656 = vrot.lane.b32.xlu0 %v654, 32
    %v657 = vpop.permute.xlu0 %656
    %v659 = vadd.f32 %v649, %v657
    %v660 = vtanh.pop %v659
    %662 = vrot.lane.b32.xlu0 %v660, 64
    %v663 = vpop.permute.xlu0 %662
    %v665 = vmul.f32 %v644, %v663
    %v666 = vpack.c.bf16 %v665, %v665
    %v668 = vrot.slane %v666, 2
    %669 = vrot.lane.b32.xlu0 %v668, 32
    %v670 = vpop.permute.xlu0 %669
    %v672 = vsel %vm128, %v670, 0
    %674 = vmatprep.subr.bf16.mxu0 0
    %675 = vmatpush1.bf16.msra.mxu0 %v124
    %676 = vmatprep.subr.bf16.mxu0 0
    %677 = vmatpush1.bf16.msra.mxu0 %v125
    %678 = vmatprep.subr.bf16.mxu0 0
    %679 = vmatpush1.bf16.msra.mxu0 0
    %680 = vmatprep.subr.bf16.mxu0 0
    %681 = vmatpush1.bf16.msra.mxu0 0
    %682 = vmatprep.subr.bf16.mxu0 0
    %683 = vmatpush1.bf16.msra.mxu0 0
    %684 = vmatprep.subr.bf16.mxu0 0
    %685 = vmatpush1.bf16.msra.mxu0 0
    %686 = vmatprep.subr.bf16.mxu0 0
    %687 = vmatpush1.bf16.msra.mxu0 0
    %688 = vmatprep.subr.bf16.mxu0 0
    %689 = vmatpush1.bf16.msra.mxu0 0
    %690 = vmatprep.subr.bf16.mxu0 0
    %691 = vmatpush1.bf16.msra.mxu0 0
    %692 = vmatprep.subr.bf16.mxu0 0
    %693 = vmatpush1.bf16.msra.mxu0 0
    %694 = vmatprep.subr.bf16.mxu0 0
    %695 = vmatpush1.bf16.msra.mxu0 0
    %696 = vmatprep.subr.bf16.mxu0 0
    %697 = vmatpush1.bf16.msra.mxu0 0
    %698 = vmatprep.subr.bf16.mxu0 0
    %699 = vmatpush1.bf16.msra.mxu0 0
    %700 = vmatprep.subr.bf16.mxu0 0
    %701 = vmatpush1.bf16.msra.mxu0 0
    %702 = vmatprep.subr.bf16.mxu0 0
    %703 = vmatpush1.bf16.msra.mxu0 0
    %704 = vmatprep.subr.bf16.mxu0 0
    %705 = vmatpush1.bf16.msra.mxu0 0
    %706 = vmatprep.mubr.bf16.mxu0 0
    %707 = vmatmul.mubr.bf16.gmra.mrb[0].mxu0 %v672
    %v708 = vpop.f32.mrb[0].mxu0
    %v709 = vadd.f32 0.0, %v708
    %v710 = vpop.f32.mrb[0].mxu0
    %v711 = vpop.f32.mrb[0].mxu0
    %v712 = vpop.f32.mrb[0].mxu0
    %713 = vdwg.mxu0
    %v715 = vrot.slane %v709, 2
    %v717 = vadd.f32 %v109, %v715
    %v718 = vxor.u32 %v717, 2147483648
    %v719 = vmul.f32 %v718, 1.442695
    %v720 = vpow.pop %v719
    %v721 = vadd.f32 %v720, 1.0
    %v722 = vrcp.pop %v721
    %v723 = vmul.f32 1.0, %v722
    %v724 = vtanh.pop %v717
    %v726 = vrot.slane %v659, 6
    %v728 = vmul.f32 %v723, %v726
    %730 = vrot.lane.b32.xlu0 %v724, 64
    %v731 = vpop.permute.xlu0 %730
    %v733 = vmul.f32 %v723, %v731
    %735 = vrot.lane.b32.xlu0 %v733, 32
    %v736 = vpop.permute.xlu0 %735
    %v738 = vadd.f32 %v728, %v736
    %v739 = vtanh.pop %v738
    %741 = vrot.lane.b32.xlu0 %v739, 64
    %v742 = vpop.permute.xlu0 %741
    %v744 = vmul.f32 %v723, %v742
    %v745 = vpack.c.bf16 %v744, %v744
    %v746 = vld [vmem:[%s4] sm:$0xf]
    %v747 = vld [vmem:[%s4 + $0x4] sm:$0xf]
    %v748 = vld [vmem:[%s4 + $0x8] sm:$0xf]
    %v749 = vld [vmem:[%s4 + $0xc] sm:$0xf]
    %v750 = vld [vmem:[%s5] sm:$0x1]
    %v752 = vlaneseq
    %v753 = vshrl.u32 %v752, 7
    %v754 = vsub.s32 0, %v753
    %v755 = vrot.slane %v750, %v754
    %v758 = vrot.slane %v745, 3
    %759 = vrot.lane.b32.xlu0 %v758, 32
    %v760 = vpop.permute.xlu0 %759
    %v765 = vunpack.c.l.b16 %v746
    %v766 = vunpack.c.l.b16 %v747
    %v767 = vunpack.c.l.b16 %v748
    %v768 = vunpack.c.l.b16 %v749
    %v769 = vpack.c.b16 %v766, %v765
    %v770 = vpack.c.b16 %v768, %v767
    %v774 = vsel %vm128, %v760, 0
    %776 = vmatprep.subr.bf16.mxu0 0
    %777 = vmatpush1.bf16.msra.mxu0 %v769
    %778 = vmatprep.subr.bf16.mxu0 0
    %779 = vmatpush1.bf16.msra.mxu0 %v770
    %780 = vmatprep.subr.bf16.mxu0 0
    %781 = vmatpush1.bf16.msra.mxu0 0
    %782 = vmatprep.subr.bf16.mxu0 0
    %783 = vmatpush1.bf16.msra.mxu0 0
    %784 = vmatprep.subr.bf16.mxu0 0
    %785 = vmatpush1.bf16.msra.mxu0 0
    %786 = vmatprep.subr.bf16.mxu0 0
    %787 = vmatpush1.bf16.msra.mxu0 0
    %788 = vmatprep.subr.bf16.mxu0 0
    %789 = vmatpush1.bf16.msra.mxu0 0
    %790 = vmatprep.subr.bf16.mxu0 0
    %791 = vmatpush1.bf16.msra.mxu0 0
    %792 = vmatprep.subr.bf16.mxu0 0
    %793 = vmatpush1.bf16.msra.mxu0 0
    %794 = vmatprep.subr.bf16.mxu0 0
    %795 = vmatpush1.bf16.msra.mxu0 0
    %796 = vmatprep.subr.bf16.mxu0 0
    %797 = vmatpush1.bf16.msra.mxu0 0
    %798 = vmatprep.subr.bf16.mxu0 0
    %799 = vmatpush1.bf16.msra.mxu0 0
    %800 = vmatprep.subr.bf16.mxu0 0
    %801 = vmatpush1.bf16.msra.mxu0 0
    %802 = vmatprep.subr.bf16.mxu0 0
    %803 = vmatpush1.bf16.msra.mxu0 0
    %804 = vmatprep.subr.bf16.mxu0 0
    %805 = vmatpush1.bf16.msra.mxu0 0
    %806 = vmatprep.subr.bf16.mxu0 0
    %807 = vmatpush1.bf16.msra.mxu0 0
    %808 = vmatprep.mubr.bf16.mxu0 0
    %809 = vmatmul.mubr.bf16.gmra.mrb[0].mxu0 %v774
    %v810 = vpop.f32.mrb[0].mxu0
    %v811 = vadd.f32 %v755, %v810
    %v812 = vpop.f32.mrb[0].mxu0
    %v813 = vpop.f32.mrb[0].mxu0
    %v814 = vpop.f32.mrb[0].mxu0
    %815 = vdwg.mxu0
    %vm816 = vcmask 17408
    %817 = vst.msk [vmem:[#allocation5] sm:$0x3] %vm816, %v811
    // Predicated region
    $region30: #{tpu_custom_call.1} parent=1 // pred_check
      _
    $region31: #{tpu_custom_call.1} parent=1 // pred_check_branch
      %819 = sbr.rel (0) target = $region33
    $region32: #{tpu_custom_call.1} parent=1 // pred_region
      %s821 = ssub.s32 32, 32
      %822 = vsyncadd [#allocation4], %s821
      %s824 = sshll.u32 [#allocation5], 4
      %s825 = int_to_ptr.vmem [resolvable:$true] %s824
      %827 = dma.vmem_to_hbm [thread:$0]  %s825, 32, %s6, [#allocation4]
    $region33: #{tpu_custom_call.1} parent=1 // pred_fallthru
      _
    // Predicated region
    $region34: #{tpu_custom_call.1} parent=1 // pred_check
      _
    $region35: #{tpu_custom_call.1} parent=1 // pred_check_branch
      %829 = sbr.rel (0) target = $region37
    $region36: #{tpu_custom_call.1} parent=1 // pred_region
      %830 = dma.done [#allocation4], 32
    $region37: #{tpu_custom_call.1} parent=1 // pred_fallthru
      _
    %831 = vsyncpa [#allocation3], 1
    %832 = vsyncpa [#allocation4], 1

</llo_original>
